<compile_context>
chip_gen: v7x
topology: tpu7x:2x2x1
jax: 0.10.0
libtpu: 0.0.40
codegen_flags: <defaults>
</compile_context>

<pallas_src>
import math
import functools

import jax
import jax.numpy as jnp
from jax import lax
from jax.experimental import pallas as pl
from jax.experimental.pallas import tpu as pltpu

_EPS = 1e-12  # matches torch.nn.functional.normalize default eps

_VMEM_DOUBLE_BUFFER_BUDGET = 40 << 20   # keep headroom under v7x's 64 MiB / TC
_VMEM_LIMIT_CAP = 48 << 20
_VMEM_LIMIT_FLOOR = 32 << 20            # override v5e's 16 MiB scoped default


def _round_up(a: int, b: int) -> int:
    return ((a + b - 1) // b) * b


def _sph_kernel(r_ref, o_ref, *, lmax: int):
    """e3nn-convention spherical harmonics ('component', normalize=True).

    r_ref: (3, TS, 128)             xyz of one tile of edges (edges over sublanes x lanes)
    o_ref: ((lmax+1)^2, TS, 128)    Y_00, Y_1{x,y,z}, Y_2{..}, ... per edge
    """
    x = r_ref[0, :, :].astype(jnp.float32)
    y = r_ref[1, :, :].astype(jnp.float32)
    z = r_ref[2, :, :].astype(jnp.float32)

    # normalize=True, matching torch.nn.functional.normalize(r, eps=1e-12):
    #   v / max(||v||, eps) == v * rsqrt(max(||v||^2, eps^2))
    r2 = x * x + y * y + z * z
    inv = lax.rsqrt(jnp.maximum(r2, _EPS * _EPS))
    x = x * inv
    y = y * inv
    z = z * inv

    odt = o_ref.dtype

    # NOTE: padded / out-of-range edge columns (zero vectors or garbage) produce
    # Y_00 = 1 (or junk) here; the wrapper slices them off. Never reduce over the
    # padded region inside this kernel.
    o_ref[0, :, :] = jnp.ones(x.shape, odt)

    if lmax >= 1:
        # l = 1: sqrt(3) * (x, y, z)   (e3nn xyz ordering)
        c1 = math.sqrt(3.0)
        o_ref[1, :, :] = (c1 * x).astype(odt)
        o_ref[2, :, :] = (c1 * y).astype(odt)
        o_ref[3, :, :] = (c1 * z).astype(odt)

    if lmax >= 2:
        # l = 2: sqrt(5)-scaled polynomials (e3nn _spherical_harmonics, 'component')
        c15 = math.sqrt(15.0)
        c5 = math.sqrt(5.0)
        x2 = x * x
        y2 = y * y
        z2 = z * z
        o_ref[4, :, :] = (c15 * x * z).astype(odt)
        o_ref[5, :, :] = (c15 * x * y).astype(odt)
        o_ref[6, :, :] = (c5 * (y2 - 0.5 * (x2 + z2))).astype(odt)
        o_ref[7, :, :] = (c15 * y * z).astype(odt)
        o_ref[8, :, :] = ((c15 / 2.0) * (z2 - x2)).astype(odt)
    # TODO(synk): extend explicit polynomials beyond lmax=2 if higher lmax is needed.


def _pick_tile(n128: int, sublane_tile: int, align: int, bytes_per_sublane_row: int) -> int:
    """Choose a sublane tile that (a) is a multiple of `align` or equals n128,
    (b) fits the double-buffered VMEM budget, (c) yields >= 2 grid blocks when
    possible so both v7x TensorCores receive work."""
    ts_cap = max(align,
                 (_VMEM_DOUBLE_BUFFER_BUDGET // (2 * bytes_per_sublane_row)) // align * align)
    st = max(align, (sublane_tile // align) * align)  # round user value down to alignment
    st = min(st, ts_cap)
    if n128 <= st:
        # Split into >= 2 blocks (keeping alignment) so a single-block grid does
        # not leave one v7x TensorCore idle; fall back to the full dim if the
        # aligned half would not actually split.
        half = _round_up(pl.cdiv(n128, 2), align)
        return half if half < n128 else n128
    return st


def spherical_encoding_lane_major(
    r_t: jax.Array,
    lmax: int = 2,
    sublane_tile: int = 1024,
    out_dtype=jnp.float32,
) -> jax.Array:
    """PRIMARY entry point: r_t (3, Np) with Np % 128 == 0 -> ((lmax+1)^2, Np).

    Callers that keep edge data lane-major avoid all wrapper layout passes and
    run this HBM-bound kernel at roofline. out_dtype=jnp.bfloat16 halves the
    output traffic (the dominant term) when the downstream tensor product
    tolerates it; compute stays f32.
    """
    assert r_t.ndim == 2 and r_t.shape[0] == 3 and r_t.shape[1] % 128 == 0
    assert 0 <= lmax <= 2, "explicit polynomials implemented up to lmax=2"
    out_dim = (lmax + 1) ** 2
    out_dtype = jnp.dtype(out_dtype)
    in_dtype = jnp.dtype(r_t.dtype)

    np_total = r_t.shape[1]
    n128 = np_total // 128                  # edge groups of 128 (the lane dim)

    # Sublane alignment: 8 for f32, 16 when any bf16/fp8 operand is involved
    # (sub-32-bit dtypes pack along sublanes).
    align = 16 if (out_dtype.itemsize < 4 or in_dtype.itemsize < 4) else 8

    bytes_per_sublane_row = 128 * (3 * in_dtype.itemsize + out_dim * out_dtype.itemsize)
    ts = _pick_tile(n128, sublane_tile, align, bytes_per_sublane_row)
    grid = (pl.cdiv(n128, ts),)             # partial last block handled by Pallas masking

    needed_vmem = 2 * ts * bytes_per_sublane_row + (2 << 20)
    vmem_limit = min(_VMEM_LIMIT_CAP, max(_VMEM_LIMIT_FLOOR, needed_vmem))

    cost = pl.CostEstimate(
        flops=30 * np_total,
        transcendentals=np_total,
        bytes_accessed=np_total * (3 * in_dtype.itemsize + out_dim * out_dtype.itemsize),
    )

    r3d = r_t.reshape(3, n128, 128)         # free reshape: split edges into (sublane, lane)
    out3d = pl.pallas_call(
        functools.partial(_sph_kernel, lmax=lmax),
        out_shape=jax.ShapeDtypeStruct((out_dim, n128, 128), out_dtype),
        grid=grid,
        in_specs=[pl.BlockSpec((3, ts, 128), lambda i: (0, i, 0))],
        out_specs=pl.BlockSpec((out_dim, ts, 128), lambda i: (0, i, 0)),
        compiler_params=pltpu.CompilerParams(
            dimension_semantics=("parallel",),
            vmem_limit_bytes=vmem_limit,
        ),
        cost_estimate=cost,
    )(r3d)
    return out3d.reshape(out_dim, np_total)


def spherical_encoding(
    r: jax.Array,
    lmax: int = 2,
    sublane_tile: int = 1024,
    out_dtype=jnp.float32,
) -> jax.Array:
    """PyTorch-compatible API: r (N, 3) -> (N, (lmax+1)^2) spherical harmonics.

    NOTE: the (N,3)->(3,Np) pad/transpose and the trailing (out,Np)->(N,out)
    transpose add ~2x the kernel's own HBM traffic (and the final 9-lane-wide
    transpose writes are masked stores in XLA). Hot paths should keep edges
    lane-major and call `spherical_encoding_lane_major` directly.
    """
    assert r.ndim == 2 and r.shape[1] == 3, "expected (N, 3) input"
    assert r.shape[0] >= 1
    n = r.shape[0]
    out_dtype = jnp.dtype(out_dtype)

    n128 = _round_up(pl.cdiv(n, 128), 16 if out_dtype.itemsize < 4 else 8)
    n_pad = n128 * 128

    # Single materialization pass producing the lane-major (3, n_pad) layout.
    # TODO(synk): fuse this layout change (and the trailing transpose) into the
    # consumer kernel to eliminate the extra HBM passes entirely.
    r_t = (
        jnp.zeros((3, n_pad), dtype=jnp.float32)
        .at[:, :n]
        .set(r.astype(jnp.float32).T)
    )

    out = spherical_encoding_lane_major(
        r_t, lmax=lmax, sublane_tile=sublane_tile, out_dtype=out_dtype
    )
    return out[:, :n].T  # (N, (lmax+1)^2)


def _reference(r: jax.Array, lmax: int = 2) -> jax.Array:
    """Plain-jnp reference (e3nn 'component' normalization, normalize=True)."""
    nrm = jnp.sqrt(jnp.sum(r * r, axis=-1, keepdims=True))
    u = r / jnp.maximum(nrm, _EPS)
    x, y, z = u[:, 0], u[:, 1], u[:, 2]
    c1, c15, c5 = math.sqrt(3.0), math.sqrt(15.0), math.sqrt(5.0)
    cols = [jnp.ones_like(x)]
    if lmax >= 1:
        cols += [c1 * x, c1 * y, c1 * z]
    if lmax >= 2:
        cols += [
            c15 * x * z,
            c15 * x * y,
            c5 * (y * y - 0.5 * (x * x + z * z)),
            c15 * y * z,
            (c15 / 2.0) * (z * z - x * x),
        ]
    return jnp.stack(cols, axis=-1)


if __name__ == "__main__":
    key = jax.random.PRNGKey(0)
    k0, k1, k2 = jax.random.split(key, 3)

    # 1) Small, module-consistent shape: 8 edge vectors with 3 components each.
    r = jax.random.normal(k0, (8, 3), dtype=jnp.float32)
    sh = jax.block_until_ready(spherical_encoding(r, lmax=2))
    assert sh.shape == (8, 9), sh.shape
    assert sh.dtype == jnp.float32
    assert bool(jnp.allclose(sh, _reference(r, 2), atol=1e-4, rtol=1e-4))

    # component normalization sanity: ||Y_l||^2 == 2l+1 per edge
    n1 = jnp.sum(sh[:, 1:4] ** 2, axis=-1)
    n2 = jnp.sum(sh[:, 4:9] ** 2, axis=-1)
    assert bool(jnp.allclose(n1, 3.0, atol=1e-4)) and bool(jnp.allclose(n2, 5.0, atol=1e-4))

    # 2) Non-multiple-of-128 edge count, tiny tile -> multi-block grid with a
    #    masked partial last block; also exercises the tile-alignment rounding
    #    (sublane_tile=13 is rounded down to 8 internally).
    r2 = jax.random.normal(k1, (1500, 3), dtype=jnp.float32)
    sh2 = jax.block_until_ready(spherical_encoding(r2, lmax=2, sublane_tile=13))
    assert sh2.shape == (1500, 9)
    assert bool(jnp.allclose(sh2, _reference(r2, 2), atol=1e-4, rtol=1e-4))

    # 3) Lane-major primary API (no wrapper layout passes), f32 output.
    #    Np = 2048 -> n128 = 16: default tile logic splits into >= 2 blocks.
    r3 = jax.random.normal(k2, (2048, 3), dtype=jnp.float32)
    r3_t = r3.T  # (3, 2048), lane-major
    sh3 = jax.block_until_ready(spherical_encoding_lane_major(r3_t, lmax=2))
    assert sh3.shape == (9, 2048)
    assert bool(jnp.allclose(sh3.T, _reference(r3, 2), atol=1e-4, rtol=1e-4))

    # 4) Lane-major with bf16 output (traffic-reduced variant).
    sh4 = jax.block_until_ready(
        spherical_encoding_lane_major(r3_t, lmax=2, out_dtype=jnp.bfloat16)
    )
    assert sh4.shape == (9, 2048) and sh4.dtype == jnp.bfloat16
    assert bool(
        jnp.allclose(sh4.T.astype(jnp.float32), _reference(r3, 2), atol=3e-2, rtol=2e-2)
    )

    print("KERNEL_OK")
</pallas_src>

<mosaic_0001>
module attributes {stable_mosaic.version = 11 : i64} {
  func.func @_sph_kernel(%arg0: i32, %arg1: memref<3x8x128xf32, #tpu.memory_space<vmem>>, %arg2: memref<9x8x128xf32, #tpu.memory_space<vmem>>) attributes {dimension_semantics = [#tpu.dimension_semantics<parallel>], iteration_bounds = array<i64: 1>, scalar_prefetch = 0 : i64, scratch_operands = 0 : i64, tpu.core_type = #tpu.core_type<tc>, window_params = [{transform_indices = @transform_0, window_bounds = array<i64: 3, 8, 128>}, {transform_indices = @transform_1, window_bounds = array<i64: 9, 8, 128>}]} {
    %c0 = arith.constant 0 : index
    %c0_0 = arith.constant 0 : index
    %c0_1 = arith.constant 0 : index
    %0 = vector.load %arg1[%c0, %c0_0, %c0_1] : memref<3x8x128xf32, #tpu.memory_space<vmem>>, vector<1x8x128xf32>
    %1 = vector.shape_cast %0 : vector<1x8x128xf32> to vector<8x128xf32>
    %c1 = arith.constant 1 : index
    %c0_2 = arith.constant 0 : index
    %c0_3 = arith.constant 0 : index
    %2 = vector.load %arg1[%c1, %c0_2, %c0_3] : memref<3x8x128xf32, #tpu.memory_space<vmem>>, vector<1x8x128xf32>
    %3 = vector.shape_cast %2 : vector<1x8x128xf32> to vector<8x128xf32>
    %c2 = arith.constant 2 : index
    %c0_4 = arith.constant 0 : index
    %c0_5 = arith.constant 0 : index
    %4 = vector.load %arg1[%c2, %c0_4, %c0_5] : memref<3x8x128xf32, #tpu.memory_space<vmem>>, vector<1x8x128xf32>
    %5 = vector.shape_cast %4 : vector<1x8x128xf32> to vector<8x128xf32>
    %6 = arith.mulf %1, %1 : vector<8x128xf32>
    %7 = arith.mulf %3, %3 : vector<8x128xf32>
    %8 = arith.addf %6, %7 : vector<8x128xf32>
    %9 = arith.mulf %5, %5 : vector<8x128xf32>
    %10 = arith.addf %8, %9 : vector<8x128xf32>
    %cst = arith.constant 1.000000e-24 : f32
    %11 = vector.broadcast %cst : f32 to vector<8x128xf32>
    %12 = arith.maximumf %10, %11 : vector<8x128xf32>
    %13 = math.rsqrt %12 : vector<8x128xf32>
    %14 = arith.mulf %1, %13 : vector<8x128xf32>
    %15 = arith.mulf %3, %13 : vector<8x128xf32>
    %16 = arith.mulf %5, %13 : vector<8x128xf32>
    %cst_6 = arith.constant 1.000000e+00 : f32
    %17 = vector.broadcast %cst_6 : f32 to vector<8x128xf32>
    %c0_7 = arith.constant 0 : index
    %c0_8 = arith.constant 0 : index
    %c0_9 = arith.constant 0 : index
    %18 = vector.load %arg2[%c0_7, %c0_8, %c0_9] : memref<9x8x128xf32, #tpu.memory_space<vmem>>, vector<1x8x128xf32>
    %19 = vector.shape_cast %18 : vector<1x8x128xf32> to vector<8x128xf32>
    %20 = vector.shape_cast %17 : vector<8x128xf32> to vector<1x8x128xf32>
    tpu.vector_store %arg2[%c0_7, %c0_8, %c0_9], %20 {strides = array<i32>} : memref<9x8x128xf32, #tpu.memory_space<vmem>>, vector<1x8x128xf32>,
    %cst_10 = arith.constant 1.73205078 : f32
    %21 = vector.broadcast %cst_10 : f32 to vector<8x128xf32>
    %22 = arith.mulf %21, %14 : vector<8x128xf32>
    %c1_11 = arith.constant 1 : index
    %c0_12 = arith.constant 0 : index
    %c0_13 = arith.constant 0 : index
    %23 = vector.load %arg2[%c1_11, %c0_12, %c0_13] : memref<9x8x128xf32, #tpu.memory_space<vmem>>, vector<1x8x128xf32>
    %24 = vector.shape_cast %23 : vector<1x8x128xf32> to vector<8x128xf32>
    %25 = vector.shape_cast %22 : vector<8x128xf32> to vector<1x8x128xf32>
    tpu.vector_store %arg2[%c1_11, %c0_12, %c0_13], %25 {strides = array<i32>} : memref<9x8x128xf32, #tpu.memory_space<vmem>>, vector<1x8x128xf32>,
    %cst_14 = arith.constant 1.73205078 : f32
    %26 = vector.broadcast %cst_14 : f32 to vector<8x128xf32>
    %27 = arith.mulf %26, %15 : vector<8x128xf32>
    %c2_15 = arith.constant 2 : index
    %c0_16 = arith.constant 0 : index
    %c0_17 = arith.constant 0 : index
    %28 = vector.load %arg2[%c2_15, %c0_16, %c0_17] : memref<9x8x128xf32, #tpu.memory_space<vmem>>, vector<1x8x128xf32>
    %29 = vector.shape_cast %28 : vector<1x8x128xf32> to vector<8x128xf32>
    %30 = vector.shape_cast %27 : vector<8x128xf32> to vector<1x8x128xf32>
    tpu.vector_store %arg2[%c2_15, %c0_16, %c0_17], %30 {strides = array<i32>} : memref<9x8x128xf32, #tpu.memory_space<vmem>>, vector<1x8x128xf32>,
    %cst_18 = arith.constant 1.73205078 : f32
    %31 = vector.broadcast %cst_18 : f32 to vector<8x128xf32>
    %32 = arith.mulf %31, %16 : vector<8x128xf32>
    %c3 = arith.constant 3 : index
    %c0_19 = arith.constant 0 : index
    %c0_20 = arith.constant 0 : index
    %33 = vector.load %arg2[%c3, %c0_19, %c0_20] : memref<9x8x128xf32, #tpu.memory_space<vmem>>, vector<1x8x128xf32>
    %34 = vector.shape_cast %33 : vector<1x8x128xf32> to vector<8x128xf32>
    %35 = vector.shape_cast %32 : vector<8x128xf32> to vector<1x8x128xf32>
    tpu.vector_store %arg2[%c3, %c0_19, %c0_20], %35 {strides = array<i32>} : memref<9x8x128xf32, #tpu.memory_space<vmem>>, vector<1x8x128xf32>,
    %36 = arith.mulf %14, %14 : vector<8x128xf32>
    %37 = arith.mulf %15, %15 : vector<8x128xf32>
    %38 = arith.mulf %16, %16 : vector<8x128xf32>
    %cst_21 = arith.constant 3.87298346 : f32
    %39 = vector.broadcast %cst_21 : f32 to vector<8x128xf32>
    %40 = arith.mulf %39, %14 : vector<8x128xf32>
    %41 = arith.mulf %40, %16 : vector<8x128xf32>
    %c4 = arith.constant 4 : index
    %c0_22 = arith.constant 0 : index
    %c0_23 = arith.constant 0 : index
    %42 = vector.load %arg2[%c4, %c0_22, %c0_23] : memref<9x8x128xf32, #tpu.memory_space<vmem>>, vector<1x8x128xf32>
    %43 = vector.shape_cast %42 : vector<1x8x128xf32> to vector<8x128xf32>
    %44 = vector.shape_cast %41 : vector<8x128xf32> to vector<1x8x128xf32>
    tpu.vector_store %arg2[%c4, %c0_22, %c0_23], %44 {strides = array<i32>} : memref<9x8x128xf32, #tpu.memory_space<vmem>>, vector<1x8x128xf32>,
    %cst_24 = arith.constant 3.87298346 : f32
    %45 = vector.broadcast %cst_24 : f32 to vector<8x128xf32>
    %46 = arith.mulf %45, %14 : vector<8x128xf32>
    %47 = arith.mulf %46, %15 : vector<8x128xf32>
    %c5 = arith.constant 5 : index
    %c0_25 = arith.constant 0 : index
    %c0_26 = arith.constant 0 : index
    %48 = vector.load %arg2[%c5, %c0_25, %c0_26] : memref<9x8x128xf32, #tpu.memory_space<vmem>>, vector<1x8x128xf32>
    %49 = vector.shape_cast %48 : vector<1x8x128xf32> to vector<8x128xf32>
    %50 = vector.shape_cast %47 : vector<8x128xf32> to vector<1x8x128xf32>
    tpu.vector_store %arg2[%c5, %c0_25, %c0_26], %50 {strides = array<i32>} : memref<9x8x128xf32, #tpu.memory_space<vmem>>, vector<1x8x128xf32>,
    %51 = arith.addf %36, %38 : vector<8x128xf32>
    %cst_27 = arith.constant 5.000000e-01 : f32
    %52 = vector.broadcast %cst_27 : f32 to vector<8x128xf32>
    %53 = arith.mulf %52, %51 : vector<8x128xf32>
    %54 = arith.subf %37, %53 : vector<8x128xf32>
    %cst_28 = arith.constant 2.23606801 : f32
    %55 = vector.broadcast %cst_28 : f32 to vector<8x128xf32>
    %56 = arith.mulf %55, %54 : vector<8x128xf32>
    %c6 = arith.constant 6 : index
    %c0_29 = arith.constant 0 : index
    %c0_30 = arith.constant 0 : index
    %57 = vector.load %arg2[%c6, %c0_29, %c0_30] : memref<9x8x128xf32, #tpu.memory_space<vmem>>, vector<1x8x128xf32>
    %58 = vector.shape_cast %57 : vector<1x8x128xf32> to vector<8x128xf32>
    %59 = vector.shape_cast %56 : vector<8x128xf32> to vector<1x8x128xf32>
    tpu.vector_store %arg2[%c6, %c0_29, %c0_30], %59 {strides = array<i32>} : memref<9x8x128xf32, #tpu.memory_space<vmem>>, vector<1x8x128xf32>,
    %cst_31 = arith.constant 3.87298346 : f32
    %60 = vector.broadcast %cst_31 : f32 to vector<8x128xf32>
    %61 = arith.mulf %60, %15 : vector<8x128xf32>
    %62 = arith.mulf %61, %16 : vector<8x128xf32>
    %c7 = arith.constant 7 : index
    %c0_32 = arith.constant 0 : index
    %c0_33 = arith.constant 0 : index
    %63 = vector.load %arg2[%c7, %c0_32, %c0_33] : memref<9x8x128xf32, #tpu.memory_space<vmem>>, vector<1x8x128xf32>
    %64 = vector.shape_cast %63 : vector<1x8x128xf32> to vector<8x128xf32>
    %65 = vector.shape_cast %62 : vector<8x128xf32> to vector<1x8x128xf32>
    tpu.vector_store %arg2[%c7, %c0_32, %c0_33], %65 {strides = array<i32>} : memref<9x8x128xf32, #tpu.memory_space<vmem>>, vector<1x8x128xf32>,
    %66 = arith.subf %38, %36 : vector<8x128xf32>
    %cst_34 = arith.constant 1.93649173 : f32
    %67 = vector.broadcast %cst_34 : f32 to vector<8x128xf32>
    %68 = arith.mulf %67, %66 : vector<8x128xf32>
    %c8 = arith.constant 8 : index
    %c0_35 = arith.constant 0 : index
    %c0_36 = arith.constant 0 : index
    %69 = vector.load %arg2[%c8, %c0_35, %c0_36] : memref<9x8x128xf32, #tpu.memory_space<vmem>>, vector<1x8x128xf32>
    %70 = vector.shape_cast %69 : vector<1x8x128xf32> to vector<8x128xf32>
    %71 = vector.shape_cast %68 : vector<8x128xf32> to vector<1x8x128xf32>
    tpu.vector_store %arg2[%c8, %c0_35, %c0_36], %71 {strides = array<i32>} : memref<9x8x128xf32, #tpu.memory_space<vmem>>, vector<1x8x128xf32>,
    return
  }
  func.func @transform_0(%arg0: i32) -> (i32, i32, i32) {
    %c0_i32 = arith.constant 0 : i32
    %c0_i32_0 = arith.constant 0 : i32
    %c0_i32_1 = arith.constant 0 : i32
    return %c0_i32, %arg0, %c0_i32_0 : i32, i32, i32
  }
  func.func @transform_1(%arg0: i32) -> (i32, i32, i32) {
    %c0_i32 = arith.constant 0 : i32
    %c0_i32_0 = arith.constant 0 : i32
    %c0_i32_1 = arith.constant 0 : i32
    return %c0_i32, %arg0, %c0_i32_0 : i32, i32, i32
  }
}

</mosaic_0001>

<llo_original>
// kernel: tpu_custom_call.1
$region0: #{tpu_custom_call.1}
  #allocation0 [shape = 'u32[]', space=smem, size = 0x4, offset = 0x4, fixed_abs, tag = 'smem constant byte address 0x4 - core index']
  #allocation1 [shape = 'u32[144,128]{1,0:T(1,128)}', space=vmem, size = 0x12000, scoped, tag = 'internal scratch']
  %s0 = inlined_call_operand.hbm [shape: f32[3,8,128], index: 0, kind: input, shape index: {}]
  %s1 = inlined_call_operand.hbm [shape: f32[9,8,128], index: 1, kind: output, shape index: {}]
  %s2 = sld [smem:[#allocation0]]
  $region18: #{tpu_custom_call.1} parent=0
    _
  %s4 = ssub.s32 1, %s2
  %s5 = scalar_select 0, %s4, %s2
  $region1: #{tpu_custom_call.1} parent=0
    #allocation2 [shape = 'u8[12288]{0}', space=vmem, size = 0x3000, scoped, tag = 'input window, operand 0, single buffered']
    #allocation3 [shape = 's32[1]{0}', space=sflag, size = 0x4, scoped, tag = 'scoped memory for tpu_custom_call.1']
    #allocation4 [shape = 's32[1]{0}', space=sflag, size = 0x4, scoped, tag = 'scoped memory for tpu_custom_call.1']
    #allocation5 [shape = 'u8[36864]{0}', space=vmem, size = 0x9000, scoped, tag = 'output window, operand 0, single buffered']
    %6 = vsyncpa [#allocation3], 0
    %7 = vsyncpa [#allocation4], 0
    // Predicated region
    $region2: #{tpu_custom_call.1} parent=1 // pred_check
      _
    $region3: #{tpu_custom_call.1} parent=1 // pred_check_branch
      %9 = sbr.rel (0) target = $region5
    $region4: #{tpu_custom_call.1} parent=1 // pred_region
      %s11 = ssub.s32 384, 384
      %12 = vsyncadd [#allocation3], %s11
      %s13 = sshll.u32 [#allocation2], 4
      %s14 = int_to_ptr.vmem [resolvable:$true] %s13
      %19 = dma.hbm_to_vmem [thread:$0]  %s0, 384, %s14, [#allocation3], 128, 128, 8
    $region5: #{tpu_custom_call.1} parent=1 // pred_fallthru
      _
    // Predicated region
    $region6: #{tpu_custom_call.1} parent=1 // pred_check
      _
    $region7: #{tpu_custom_call.1} parent=1 // pred_check_branch
      %21 = sbr.rel (0) target = $region9
    $region8: #{tpu_custom_call.1} parent=1 // pred_region
      %22 = dma.done [#allocation3], 384
    $region9: #{tpu_custom_call.1} parent=1 // pred_fallthru
      _
    %v23 = vld [vmem:[#allocation2] sm:$0xff]
    %s24 = scalar_lea.vmem [#allocation2], 8
    %v25 = vld [vmem:[%s24] sm:$0xff]
    %s26 = scalar_lea.vmem [#allocation2], 16
    %v27 = vld [vmem:[%s26] sm:$0xff]
    %v28 = vmul.f32 %v23, %v23
    %v29 = vmul.f32 %v25, %v25
    %v30 = vadd.f32 %v28, %v29
    %v31 = vmul.f32 %v27, %v27
    %v32 = vadd.f32 %v30, %v31
    %v33 = vmax.f32 %v32, 1e-24
    %v34 = vrsqrt.pop %v33
    %v35 = vmul.f32 %v23, %v34
    %v36 = vmul.f32 %v25, %v34
    %v37 = vmul.f32 %v27, %v34
    %38 = vst [vmem:[#allocation5] sm:$0xff] 1.0
    %v39 = vmul.f32 %v35, 1.7320508
    %s40 = scalar_lea.vmem [#allocation5], 8
    %41 = vst [vmem:[%s40] sm:$0xff] %v39
    %v42 = vmul.f32 %v36, 1.7320508
    %s43 = scalar_lea.vmem [#allocation5], 16
    %44 = vst [vmem:[%s43] sm:$0xff] %v42
    %v45 = vmul.f32 %v37, 1.7320508
    %s46 = scalar_lea.vmem [#allocation5], 24
    %47 = vst [vmem:[%s46] sm:$0xff] %v45
    %v48 = vmul.f32 %v35, %v35
    %v49 = vmul.f32 %v36, %v36
    %v50 = vmul.f32 %v37, %v37
    %v51 = vmul.f32 %v35, 3.8729835
    %v52 = vmul.f32 %v51, %v37
    %s53 = scalar_lea.vmem [#allocation5], 32
    %54 = vst [vmem:[%s53] sm:$0xff] %v52
    %v55 = vmul.f32 %v51, %v36
    %s56 = scalar_lea.vmem [#allocation5], 40
    %57 = vst [vmem:[%s56] sm:$0xff] %v55
    %v58 = vadd.f32 %v48, %v50
    %v59 = vmul.f32 %v58, 0.5
    %v60 = vsub.f32 %v49, %v59
    %v61 = vmul.f32 %v60, 2.236068
    %s62 = scalar_lea.vmem [#allocation5], 48
    %63 = vst [vmem:[%s62] sm:$0xff] %v61
    %v64 = vmul.f32 %v36, 3.8729835
    %v65 = vmul.f32 %v64, %v37
    %s66 = scalar_lea.vmem [#allocation5], 56
    %67 = vst [vmem:[%s66] sm:$0xff] %v65
    %v68 = vsub.f32 %v50, %v48
    %v69 = vmul.f32 %v68, 1.9364917
    %s70 = scalar_lea.vmem [#allocation5], 64
    %71 = vst [vmem:[%s70] sm:$0xff] %v69
    // Predicated region
    $region10: #{tpu_custom_call.1} parent=1 // pred_check
      _
    $region11: #{tpu_custom_call.1} parent=1 // pred_check_branch
      %73 = sbr.rel (0) target = $region13
    $region12: #{tpu_custom_call.1} parent=1 // pred_region
      %s75 = ssub.s32 1152, 1152
      %76 = vsyncadd [#allocation4], %s75
      %s77 = sshll.u32 [#allocation5], 4
      %s78 = int_to_ptr.vmem [resolvable:$true] %s77
      %83 = dma.vmem_to_hbm [thread:$0]  %s78, 1152, %s1, [#allocation4], 128, 128, 8
    $region13: #{tpu_custom_call.1} parent=1 // pred_fallthru
      _
    // Predicated region
    $region14: #{tpu_custom_call.1} parent=1 // pred_check
      _
    $region15: #{tpu_custom_call.1} parent=1 // pred_check_branch
      %85 = sbr.rel (0) target = $region17
    $region16: #{tpu_custom_call.1} parent=1 // pred_region
      %86 = dma.done [#allocation4], 1152
    $region17: #{tpu_custom_call.1} parent=1 // pred_fallthru
      _
    %87 = vsyncpa [#allocation3], 1
    %88 = vsyncpa [#allocation4], 1

</llo_original>
